<compile_context>
chip_gen: v7x
topology: tpu7x:2x2x1
jax: 0.10.0
libtpu: 0.0.40
codegen_flags: <defaults>
</compile_context>

<pallas_src>
import jax
import jax.numpy as jnp
from jax.experimental import pallas as pl
from jax.experimental.pallas import tpu as pltpu


# Below this, dispatch overhead + lost fusion dominate; use plain jnp.
_PALLAS_MIN_BYTES = 8 << 20  # 8 MiB

# Hard cap on a single block; the actual size is derived from VMEM budget.
_BLOCK_BYTES_CAP = 8 << 20

# Keep at least this many grid steps (when the input is big enough) so the
# "parallel" row axis can be split across v7x's two TensorCores.
_MIN_GRID_STEPS = 4


def _double_kernel(x_ref, o_ref):
    # Single VMEM load per tile; pure VPU elementwise doubling.
    x = x_ref[...]
    o_ref[...] = x + x


def _vmem_budget():
    """(max_block_bytes, vmem_limit_bytes) derived from physical VMEM.

    Input + output are each double-buffered, so resident VMEM ~= 4x block.
    v5e/v6e have 128 MiB physical VMEM, v7x only 64 MiB, so leave headroom.
    """
    try:
        phys = int(getattr(pltpu.get_tpu_info(), "vmem_capacity_bytes"))
    except Exception:
        phys = 64 << 20  # conservative: v7x per-TensorCore
    vmem_limit = min(40 << 20, (phys * 3) // 5)
    max_block = min(_BLOCK_BYTES_CAP, max(1 << 20, vmem_limit // 4))
    return max_block, vmem_limit


def _choose_layout(n_elems, itemsize):
    """Pick a pad-free lane-dense slab (rows, cols) and the row-block size.

    Returns (rows, cols, block_rows, vmem_limit_bytes), or None when no
    pad-free layout exists (caller falls back to plain jnp).  Requiring
    `cols` to divide n exactly removes the pad-concatenate / trailing-slice
    copies, which otherwise triple HBM traffic for this bandwidth-bound op.
    """
    # Sub-32-bit dtypes pack along sublanes; round rows to the native tile
    # (8 for f32, 16 for bf16, 32 for int8/fp8) to keep stores unmasked.
    sublane = max(8, 32 // max(1, itemsize))

    cols = None
    for c in (2048, 1024, 512, 256, 128):
        if n_elems % c == 0 and n_elems // c >= sublane:
            cols = c
            break
    if cols is None:
        return None
    rows = n_elems // cols

    max_block_bytes, vmem_limit = _vmem_budget()
    max_block_rows = max(sublane, max_block_bytes // (cols * itemsize))
    block_rows = max(sublane, (min(rows, max_block_rows) // sublane) * sublane)

    # Megacore (v7x): keep >= _MIN_GRID_STEPS grid steps when rows permit so
    # both TensorCores get work.  Harmless on single-TC v5e/v6e.
    if rows >= _MIN_GRID_STEPS * sublane:
        cap = max(sublane,
                  (pl.cdiv(rows, _MIN_GRID_STEPS) // sublane) * sublane)
        block_rows = min(block_rows, cap)

    return rows, cols, block_rows, vmem_limit


def _double_pallas(x, layout, *, inplace=False):
    """x + x via the row-tiled Pallas kernel on a pad-free lane-dense slab."""
    rows, cols, block_rows, vmem_limit = layout
    x2d = x.reshape(rows, cols)
    grid = (pl.cdiv(rows, block_rows),)  # partial last block handled by Pallas

    out2d = pl.pallas_call(
        _double_kernel,
        out_shape=jax.ShapeDtypeStruct((rows, cols), x2d.dtype),
        grid_spec=pltpu.PrefetchScalarGridSpec(
            num_scalar_prefetch=0,
            grid=grid,
            in_specs=[pl.BlockSpec((block_rows, cols), lambda i: (i, 0))],
            out_specs=pl.BlockSpec((block_rows, cols), lambda i: (i, 0)),
        ),
        compiler_params=pltpu.CompilerParams(
            dimension_semantics=("parallel",),
            vmem_limit_bytes=vmem_limit,
        ),
        # PyTorch `unsqueeze_` / inplace semantics: with the pad-free layout
        # the alias binds to (a reshape of) the kernel input itself, so the
        # output really reuses that HBM buffer for large activations.
        input_output_aliases=({0: 0} if inplace else {}),
    )(x2d)

    return out2d.reshape(x.shape)


def simple_unsqueeze_model(x, dimension, inplace=False, force_pallas=False):
    """JAX/Pallas equivalent of SimpleUnsqueezeModel.forward.

    `inplace` only affects buffer aliasing on the Pallas path; the returned
    value is identical in both cases (JAX arrays are immutable).
    """
    n_bytes = x.size * jnp.dtype(x.dtype).itemsize
    layout = None
    if force_pallas or n_bytes >= _PALLAS_MIN_BYTES:
        layout = _choose_layout(x.size, jnp.dtype(x.dtype).itemsize)

    if layout is not None:
        doubled = _double_pallas(x, layout, inplace=inplace)
    else:
        # Tiny or non-128-divisible size: bypass Pallas; XLA fuses the add
        # with no pad/slice copies and no custom-call overhead.
        doubled = x + x

    # torch.unsqueeze semantics: dim in [-(ndim+1), ndim]; negative dims wrap.
    ndim = doubled.ndim
    dim = dimension if dimension >= 0 else dimension + ndim + 1
    return jnp.expand_dims(doubled, axis=dim)


if __name__ == "__main__":
    key = jax.random.PRNGKey(0)
    k0, k1, k2 = jax.random.split(key, 3)

    # Small NCHW-like input, matching the glow unsqueeze test.
    x = jax.random.normal(k0, (2, 4, 16, 16), dtype=jnp.float32)
    dimension = 1  # unsqueeze at dim 1, as in the glow unsqueeze test cases
    ref = jnp.expand_dims(x + x, axis=dimension)

    # 1) Default dispatch: tiny input -> fused jnp path (no Pallas launch).
    out = jax.block_until_ready(simple_unsqueeze_model(x, dimension))
    assert out.shape == (2, 1, 4, 16, 16), out.shape
    assert out.dtype == x.dtype
    assert jnp.allclose(out, ref), "mismatch vs reference (jnp path)"

    # 2) Force the Pallas kernel on the same small input (single (8,256) block).
    out_p = jax.block_until_ready(
        simple_unsqueeze_model(x, dimension, force_pallas=True))
    assert out_p.shape == (2, 1, 4, 16, 16)
    assert jnp.allclose(out_p, ref), "mismatch vs reference (pallas path)"

    # 3) Negative dim + inplace (pad-free alias) through the Pallas path.
    out_neg = jax.block_until_ready(
        simple_unsqueeze_model(x, -1, inplace=True, force_pallas=True))
    assert out_neg.shape == (2, 4, 16, 16, 1)
    assert jnp.allclose(out_neg, jnp.expand_dims(x + x, axis=-1))

    # 4) bf16 input: dtype-aware sublane rounding (16-row blocks, unmasked).
    xb = jax.random.normal(k1, (2, 4, 16, 16), dtype=jnp.bfloat16)
    out_b = jax.block_until_ready(
        simple_unsqueeze_model(xb, 0, force_pallas=True))
    assert out_b.shape == (1, 2, 4, 16, 16)
    assert jnp.array_equal(out_b, jnp.expand_dims(xb + xb, axis=0))

    # 5) Non-128-divisible element count: pad-free rule routes to jnp path.
    xo = jax.random.normal(k2, (3, 5, 7), dtype=jnp.float32)
    out_o = jax.block_until_ready(
        simple_unsqueeze_model(xo, 2, force_pallas=True))
    assert out_o.shape == (3, 5, 1, 7)
    assert jnp.allclose(out_o, jnp.expand_dims(xo + xo, axis=2))

    # 6) Larger input exercising the tiled multi-step parallel grid
    #    (8 MiB -> slab (1024, 2048), >=4 grid steps, no padding).
    xl = jax.random.normal(jax.random.PRNGKey(1), (8, 16, 128, 128),
                           dtype=jnp.float32)
    out_l = jax.block_until_ready(simple_unsqueeze_model(xl, 0))
    assert out_l.shape == (1, 8, 16, 128, 128)
    assert jnp.allclose(out_l, jnp.expand_dims(xl + xl, axis=0))

    print("KERNEL_OK")
</pallas_src>

<mosaic_0001>
module attributes {stable_mosaic.version = 11 : i64} {
  func.func @_double_kernel(%arg0: i32, %arg1: memref<8x256xf32, #tpu.memory_space<vmem>>, %arg2: memref<8x256xf32, #tpu.memory_space<vmem>>) attributes {dimension_semantics = [#tpu.dimension_semantics<parallel>], iteration_bounds = array<i64: 1>, scalar_prefetch = 0 : i64, scratch_operands = 0 : i64, tpu.core_type = #tpu.core_type<tc>, window_params = [{transform_indices = @transform_0, window_bounds = array<i64: 8, 256>}, {transform_indices = @transform_1, window_bounds = array<i64: 8, 256>}]} {
    %c0 = arith.constant 0 : index
    %c0_0 = arith.constant 0 : index
    %0 = vector.load %arg1[%c0, %c0_0] : memref<8x256xf32, #tpu.memory_space<vmem>>, vector<8x256xf32>
    %1 = arith.addf %0, %0 : vector<8x256xf32>
    %c0_1 = arith.constant 0 : index
    %c0_2 = arith.constant 0 : index
    %2 = vector.load %arg2[%c0_1, %c0_2] : memref<8x256xf32, #tpu.memory_space<vmem>>, vector<8x256xf32>
    tpu.vector_store %arg2[%c0_1, %c0_2], %1 {strides = array<i32>} : memref<8x256xf32, #tpu.memory_space<vmem>>, vector<8x256xf32>,
    return
  }
  func.func @transform_0(%arg0: i32) -> (i32, i32) {
    %c0_i32 = arith.constant 0 : i32
    %c0_i32_0 = arith.constant 0 : i32
    return %arg0, %c0_i32 : i32, i32
  }
  func.func @transform_1(%arg0: i32) -> (i32, i32) {
    %c0_i32 = arith.constant 0 : i32
    %c0_i32_0 = arith.constant 0 : i32
    return %arg0, %c0_i32 : i32, i32
  }
}

</mosaic_0001>

<llo_original>
// kernel: tpu_custom_call.1
$region0: #{tpu_custom_call.1}
  #allocation0 [shape = 'u32[]', space=smem, size = 0x4, offset = 0x4, fixed_abs, tag = 'smem constant byte address 0x4 - core index']
  #allocation1 [shape = 'u32[144,128]{1,0:T(1,128)}', space=vmem, size = 0x12000, scoped, tag = 'internal scratch']
  %s0 = inlined_call_operand.hbm [shape: f32[8,256], index: 0, kind: input, shape index: {}]
  %s1 = inlined_call_operand.hbm [shape: f32[8,256], index: 1, kind: output, shape index: {}]
  %s2 = sld [smem:[#allocation0]]
  $region18: #{tpu_custom_call.1} parent=0
    _
  %s4 = ssub.s32 1, %s2
  %s5 = scalar_select 0, %s4, %s2
  $region1: #{tpu_custom_call.1} parent=0
    #allocation2 [shape = 'u8[8192]{0}', space=vmem, size = 0x2000, scoped, tag = 'input window, operand 0, single buffered']
    #allocation3 [shape = 's32[1]{0}', space=sflag, size = 0x4, scoped, tag = 'scoped memory for tpu_custom_call.1']
    #allocation4 [shape = 's32[1]{0}', space=sflag, size = 0x4, scoped, tag = 'scoped memory for tpu_custom_call.1']
    #allocation5 [shape = 'u8[8192]{0}', space=vmem, size = 0x2000, scoped, tag = 'output window, operand 0, single buffered']
    %6 = vsyncpa [#allocation3], 0
    %7 = vsyncpa [#allocation4], 0
    // Predicated region
    $region2: #{tpu_custom_call.1} parent=1 // pred_check
      _
    $region3: #{tpu_custom_call.1} parent=1 // pred_check_branch
      %9 = sbr.rel (0) target = $region5
    $region4: #{tpu_custom_call.1} parent=1 // pred_region
      %s11 = ssub.s32 256, 256
      %12 = vsyncadd [#allocation3], %s11
      %s14 = sshll.u32 [#allocation2], 4
      %s15 = int_to_ptr.vmem [resolvable:$true] %s14
      %17 = dma.hbm_to_vmem [thread:$0]  %s0, 256, %s15, [#allocation3]
    $region5: #{tpu_custom_call.1} parent=1 // pred_fallthru
      _
    // Predicated region
    $region6: #{tpu_custom_call.1} parent=1 // pred_check
      _
    $region7: #{tpu_custom_call.1} parent=1 // pred_check_branch
      %19 = sbr.rel (0) target = $region9
    $region8: #{tpu_custom_call.1} parent=1 // pred_region
      %20 = dma.done [#allocation3], 256
    $region9: #{tpu_custom_call.1} parent=1 // pred_fallthru
      _
    %v21 = vld [vmem:[#allocation2] sm:$0xff]
    %v22 = vld [vmem:[#allocation2 + $0x8] sm:$0xff]
    %v23 = vadd.f32 %v21, %v21
    %v24 = vadd.f32 %v22, %v22
    %25 = vst [vmem:[#allocation5] sm:$0xff] %v23
    %26 = vst [vmem:[#allocation5 + $0x8] sm:$0xff] %v24
    // Predicated region
    $region10: #{tpu_custom_call.1} parent=1 // pred_check
      _
    $region11: #{tpu_custom_call.1} parent=1 // pred_check_branch
      %28 = sbr.rel (0) target = $region13
    $region12: #{tpu_custom_call.1} parent=1 // pred_region
      %s30 = ssub.s32 256, 256
      %31 = vsyncadd [#allocation4], %s30
      %s33 = sshll.u32 [#allocation5], 4
      %s34 = int_to_ptr.vmem [resolvable:$true] %s33
      %36 = dma.vmem_to_hbm [thread:$0]  %s34, 256, %s1, [#allocation4]
    $region13: #{tpu_custom_call.1} parent=1 // pred_fallthru
      _
    // Predicated region
    $region14: #{tpu_custom_call.1} parent=1 // pred_check
      _
    $region15: #{tpu_custom_call.1} parent=1 // pred_check_branch
      %38 = sbr.rel (0) target = $region17
    $region16: #{tpu_custom_call.1} parent=1 // pred_region
      %39 = dma.done [#allocation4], 256
    $region17: #{tpu_custom_call.1} parent=1 // pred_fallthru
      _
    %40 = vsyncpa [#allocation3], 1
    %41 = vsyncpa [#allocation4], 1

</llo_original>
